<compile_context>
chip_gen: v5e
topology: v5e:2x2
jax: 0.10.0
libtpu: 0.0.40
codegen_flags: <defaults>
</compile_context>

<pallas_src>
import math

import jax
import jax.numpy as jnp
from jax.experimental import pallas as pl
from jax.experimental.pallas import tpu as pltpu


def _fused_gemm_kernel(x_ref, w_ref, b_ref, o_ref):
    """out = x @ W + b for one batch tile.

    x_ref: (TB, J*Cin)   w_ref: (J*Cin, J*Cout)   b_ref: (1, J*Cout)   o_ref: (TB, J*Cout)
    """
    acc = jnp.dot(x_ref[...], w_ref[...], preferred_element_type=jnp.float32)
    o_ref[...] = (acc + b_ref[...]).astype(o_ref.dtype)


def _round_up(n, m):
    return ((n + m - 1) // m) * m


def _fold_params(W, M, adj, adj2, bias, line_w, line_b):
    """Fold all module parameters (input-independent) into (BigW, b_tot) with

        out[b, j_r, o] = sum_{j_c, ci} x[b, j_c, ci] * BigW[(j_c, ci), (j_r, o)] + b_tot[o]
    """
    K, J, _ = adj.shape
    Cin, Cout = W.shape[1], W.shape[2]
    ck = Cout // K

    adj_f = (adj + adj2).astype(jnp.float32)                       # (K, J, J)
    eye = jnp.eye(J, dtype=jnp.float32)

    # Diagonal scale per (joint, feature column): dscale[j, i*ck+c'] = adj_f[i, j, j].
    diags = jnp.diagonal(adj_f, axis1=1, axis2=2)                  # (K, J)
    dscale = jnp.repeat(diags.T, ck, axis=1)                       # (J, Cout)
    dm = dscale * M                                                # modulation folded in

    # Off-diagonal adjacency expanded over each head's ck feature columns:
    # a_off[j_r, j_c, i*ck+c'] = adj_f[i, j_r, j_c] * (1 - delta_{j_r j_c}).
    adj_off = adj_f * (1.0 - eye)                                  # (K, J, J)
    a_off = jnp.repeat(adj_off.transpose(1, 2, 0), ck, axis=2)     # (J_r, J_c, Cout)

    # Diag path:  delta_{j_c j_r} * sum_c W0[ci, c] * dm[j_r, c] * line_w[o, c]
    t_diag = jnp.einsum('ic,jc,oc->jio', W[0], dm, line_w)         # (J, Cin, Cout)
    big_diag = jnp.einsum('jio,jr->jiro', t_diag, eye)             # (J_c, Cin, J_r, Cout)

    # Off-diag path: sum_c W1[ci, c] * M[j_c, c] * adj_off[head(c), j_r, j_c] * line_w[o, c]
    big_off = jnp.einsum('ic,qc,rqc,oc->qiro', W[1], M, a_off, line_w)

    big_w = (big_diag + big_off).reshape(J * Cin, J * Cout)
    b_tot = jnp.tile(line_b + bias, J).reshape(1, J * Cout)
    return big_w, b_tot


def modulated_graph_conv_mutil(x, W, M, adj, adj2, bias, line_w, line_b,
                               *, block_b=None, mxu_dtype=jnp.bfloat16):
    """Pallas forward for ModulatedGraphConv_mutil.

    x: (B, J, Cin) float32.  Returns (B, J, Cout) float32.
    """
    B, J, Cin = x.shape
    K = adj.shape[0]
    Cout = W.shape[-1]
    assert Cout % K == 0

    big_w, b_tot = _fold_params(W, M, adj, adj2, bias, line_w, line_b)

    # Batch tile: multiple of 8 sublanes; capped at 256 rows so the GEMM M-dim
    # amortizes the ~600-cycle per-step pipeline overhead without over-padding
    # small batches.  Pad batch to a multiple of TB (padded rows are sliced off).
    if block_b is None:
        block_b = min(_round_up(B, 8), 256)
    tb = block_b
    b_pad = _round_up(B, tb)

    x_flat = x.reshape(B, J * Cin)                                 # lane-dense input slab
    if b_pad != B:
        x_flat = jnp.pad(x_flat, ((0, b_pad - B), (0, 0)))
    x_flat = x_flat.astype(mxu_dtype)
    big_w = big_w.astype(mxu_dtype)

    out_flat = pl.pallas_call(
        _fused_gemm_kernel,
        out_shape=jax.ShapeDtypeStruct((b_pad, J * Cout), jnp.float32),
        grid=(b_pad // tb,),
        in_specs=[
            pl.BlockSpec((tb, J * Cin), lambda b: (b, 0)),             # x batch tile
            pl.BlockSpec((J * Cin, J * Cout), lambda b: (0, 0)),       # fused weight (stays resident)
            pl.BlockSpec((1, J * Cout), lambda b: (0, 0)),             # fused bias
        ],
        out_specs=pl.BlockSpec((tb, J * Cout), lambda b: (b, 0)),      # lane-dense output
        compiler_params=pltpu.CompilerParams(
            dimension_semantics=("parallel",)),
    )(x_flat, big_w, b_tot)

    return out_flat[:B].reshape(B, J, Cout)


def reference_forward(x, W, M, adj, adj2, bias, line_w, line_b):
    """Pure-JAX transcription of the PyTorch forward (for validation)."""
    K = adj.shape[0]
    h0 = x @ W[0]
    h1 = x @ W[1]
    b_, j, c = h0.shape
    ck = c // K
    h0m = (M * h0).reshape(b_, j, K, ck).transpose(0, 2, 1, 3)     # (b, k, j, ck)
    h1m = (M * h1).reshape(b_, j, K, ck).transpose(0, 2, 1, 3)
    adjf = adj + adj2
    E = jnp.eye(j, dtype=adjf.dtype)
    out = (jnp.einsum('kij,bkjd->bkid', adjf * E, h0m)
           + jnp.einsum('kij,bkjd->bkid', adjf * (1.0 - E), h1m))
    out = out.transpose(0, 2, 1, 3).reshape(b_, j, c)
    out = out @ line_w.T + line_b
    return out + bias[None, None, :]


if __name__ == "__main__":
    # Small shapes consistent with the module: B batch, J joints, K adjacency heads.
    B, J, Cin, Cout, K = 2, 16, 32, 64, 4

    key = jax.random.PRNGKey(0)
    kx, kw, km, kadj, kb, klw, klb = jax.random.split(key, 7)

    x = jax.random.normal(kx, (B, J, Cin), dtype=jnp.float32)

    # Deterministic parameter init (synthetic; mirrors shapes from __init__).
    w_bound = 1.414 * math.sqrt(6.0 / (Cin + Cout))
    W = jax.random.uniform(kw, (2, Cin, Cout), minval=-w_bound, maxval=w_bound,
                           dtype=jnp.float32)
    m_bound = 1.414 * math.sqrt(6.0 / (J + Cout))
    M = jax.random.uniform(km, (J, Cout), minval=-m_bound, maxval=m_bound,
                           dtype=jnp.float32)
    adj = jax.random.uniform(kadj, (K, J, J), dtype=jnp.float32)
    adj2 = jnp.full((K, J, J), 1e-6, dtype=jnp.float32)            # nn.init.constant_(adj2, 1e-6)
    stdv = 1.0 / math.sqrt(Cout)
    bias = jax.random.uniform(kb, (Cout,), minval=-stdv, maxval=stdv,
                              dtype=jnp.float32)
    lin_bound = 1.0 / math.sqrt(Cout)
    line_w = jax.random.uniform(klw, (Cout, Cout), minval=-lin_bound,
                                maxval=lin_bound, dtype=jnp.float32)
    line_b = jax.random.uniform(klb, (Cout,), minval=-lin_bound,
                                maxval=lin_bound, dtype=jnp.float32)

    ref = reference_forward(x, W, M, adj, adj2, bias, line_w, line_b)

    # 1) f32-operand path: validates the parameter fold exactly (tight tolerance).
    out_f32 = modulated_graph_conv_mutil(x, W, M, adj, adj2, bias, line_w, line_b,
                                         mxu_dtype=jnp.float32)
    out_f32 = jax.block_until_ready(out_f32)
    assert out_f32.shape == (B, J, Cout)
    assert jnp.allclose(out_f32, ref, atol=1e-4, rtol=1e-4), "f32 mismatch vs reference"

    # 2) Default bf16-operand / f32-accumulate path (per perf review); widened tolerance.
    out_bf16 = modulated_graph_conv_mutil(x, W, M, adj, adj2, bias, line_w, line_b)
    out_bf16 = jax.block_until_ready(out_bf16)
    assert out_bf16.shape == (B, J, Cout)
    assert jnp.allclose(out_bf16, ref, atol=2e-2, rtol=2e-2), "bf16 mismatch vs reference"

    print("KERNEL_OK")
</pallas_src>

<mosaic_0001>
module attributes {stable_mosaic.version = 11 : i64} {
  func.func @_fused_gemm_kernel(%arg0: i32, %arg1: memref<8x512xf32, #tpu.memory_space<vmem>>, %arg2: memref<512x1024xf32, #tpu.memory_space<vmem>>, %arg3: memref<1x1024xf32, #tpu.memory_space<vmem>>, %arg4: memref<8x1024xf32, #tpu.memory_space<vmem>>) attributes {dimension_semantics = [#tpu.dimension_semantics<parallel>], iteration_bounds = array<i64: 1>, scalar_prefetch = 0 : i64, scratch_operands = 0 : i64, tpu.core_type = #tpu.core_type<tc>, window_params = [{transform_indices = @transform_0, window_bounds = array<i64: 8, 512>}, {pipeline_mode = #tpu.pipeline_mode<synchronous>, transform_indices = @transform_1, window_bounds = array<i64: 512, 1024>}, {pipeline_mode = #tpu.pipeline_mode<synchronous>, transform_indices = @transform_2, window_bounds = array<i64: 1, 1024>}, {transform_indices = @transform_3, window_bounds = array<i64: 8, 1024>}]} {
    %c0 = arith.constant 0 : index
    %c0_0 = arith.constant 0 : index
    %0 = vector.load %arg1[%c0, %c0_0] : memref<8x512xf32, #tpu.memory_space<vmem>>, vector<8x512xf32>
    %c0_1 = arith.constant 0 : index
    %c0_2 = arith.constant 0 : index
    %1 = vector.load %arg2[%c0_1, %c0_2] : memref<512x1024xf32, #tpu.memory_space<vmem>>, vector<512x1024xf32>
    %cst = arith.constant dense<0.000000e+00> : vector<8x1024xf32>
    %2 = tpu.matmul %0, %1, %cst {dimension_numbers = #tpu.dot_dimension_numbers<[1], [0], [0], [1], [0, 0, 1, 1], [], []>} : vector<8x512xf32>, vector<512x1024xf32>, vector<8x1024xf32> -> vector<8x1024xf32>
    %c0_3 = arith.constant 0 : index
    %c0_4 = arith.constant 0 : index
    %3 = vector.load %arg3[%c0_3, %c0_4] : memref<1x1024xf32, #tpu.memory_space<vmem>>, vector<1x1024xf32>
    %4 = vector.broadcast %3 : vector<1x1024xf32> to vector<8x1024xf32>
    %5 = arith.addf %2, %4 : vector<8x1024xf32>
    %c0_5 = arith.constant 0 : index
    %c0_6 = arith.constant 0 : index
    %6 = vector.load %arg4[%c0_5, %c0_6] : memref<8x1024xf32, #tpu.memory_space<vmem>>, vector<8x1024xf32>
    tpu.vector_store %arg4[%c0_5, %c0_6], %5 {strides = array<i32>} : memref<8x1024xf32, #tpu.memory_space<vmem>>, vector<8x1024xf32>,
    return
  }
  func.func @transform_0(%arg0: i32) -> (i32, i32) {
    %c0_i32 = arith.constant 0 : i32
    %c0_i32_0 = arith.constant 0 : i32
    return %arg0, %c0_i32 : i32, i32
  }
  func.func @transform_1(%arg0: i32) -> (i32, i32) {
    %c0_i32 = arith.constant 0 : i32
    %c0_i32_0 = arith.constant 0 : i32
    %c0_i32_1 = arith.constant 0 : i32
    return %c0_i32, %c0_i32_0 : i32, i32
  }
  func.func @transform_2(%arg0: i32) -> (i32, i32) {
    %c0_i32 = arith.constant 0 : i32
    %c0_i32_0 = arith.constant 0 : i32
    %c0_i32_1 = arith.constant 0 : i32
    return %c0_i32, %c0_i32_0 : i32, i32
  }
  func.func @transform_3(%arg0: i32) -> (i32, i32) {
    %c0_i32 = arith.constant 0 : i32
    %c0_i32_0 = arith.constant 0 : i32
    return %arg0, %c0_i32 : i32, i32
  }
}

</mosaic_0001>

<llo_original>
// kernel: tpu_custom_call.1
$region0: #{tpu_custom_call.1}
  #allocation0 [shape = 'u32[]', space=smem, size = 0x4, offset = 0x4, fixed_abs, tag = 'smem constant byte address 0x4 - core index']
  #allocation1 [shape = 'u32[72,128]{1,0:T(1,128)}', space=vmem, size = 0x9000, scoped, tag = 'internal scratch']
  %s0 = inlined_call_operand.hbm [shape: f32[8,512], index: 0, kind: input, shape index: {}]
  %s1 = inlined_call_operand.hbm [shape: f32[512,1024], index: 1, kind: input, shape index: {}]
  %s2 = inlined_call_operand.hbm [shape: f32[1,1024], index: 2, kind: input, shape index: {}]
  %s3 = inlined_call_operand.hbm [shape: f32[8,1024], index: 3, kind: output, shape index: {}]
  %s4 = sld [smem:[#allocation0]]
  $region34: #{tpu_custom_call.1} parent=0
    _
  %s6 = ssub.s32 1, %s4
  %s7 = scalar_select 0, %s6, %s4
  $region1: #{tpu_custom_call.1} parent=0
    #allocation2 [shape = 'u8[16384]{0}', space=vmem, size = 0x4000, scoped, tag = 'input window, operand 0, single buffered']
    #allocation3 [shape = 's32[1]{0}', space=sflag, size = 0x4, scoped, tag = 'scoped memory for tpu_custom_call.1']
    #allocation4 [shape = 's32[1]{0}', space=sflag, size = 0x4, scoped, tag = 'scoped memory for tpu_custom_call.1']
    #allocation5 [shape = 'u8[2097152]{0}', space=vmem, size = 0x200000, scoped, tag = 'input window, operand 1, single buffered']
    #allocation6 [shape = 's32[1]{0}', space=sflag, size = 0x4, scoped, tag = 'scoped memory for tpu_custom_call.1']
    #allocation7 [shape = 'u8[4096]{0}', space=vmem, size = 0x1000, scoped, tag = 'input window, operand 2, single buffered']
    #allocation8 [shape = 'u8[32768]{0}', space=vmem, size = 0x8000, scoped, tag = 'output window, operand 0, single buffered']
    %8 = vsyncpa [#allocation3], 0
    %9 = vsyncpa [#allocation6], 0
    %10 = vsyncpa [#allocation4], 0
    // Predicated region
    $region2: #{tpu_custom_call.1} parent=1 // pred_check
      _
    $region3: #{tpu_custom_call.1} parent=1 // pred_check_branch
      %12 = sbr.rel (0) target = $region5
    $region4: #{tpu_custom_call.1} parent=1 // pred_region
      %14 = vsyncadd [#allocation3], 0
      %s16 = sshll.u32 %s0, 4
      %s17 = int_to_ptr.hbm [resolvable:$true] %s16
      %s18 = sshll.u32 [#allocation2], 4
      %s19 = int_to_ptr.vmem [resolvable:$true] %s18
      %21 = dma.hbm_to_vmem [thread:$0]  %s17, 512, %s19, [#allocation3]
    $region5: #{tpu_custom_call.1} parent=1 // pred_fallthru
      _
    // Predicated region
    $region6: #{tpu_custom_call.1} parent=1 // pred_check
      _
    $region7: #{tpu_custom_call.1} parent=1 // pred_check_branch
      %23 = sbr.rel (0) target = $region9
    $region8: #{tpu_custom_call.1} parent=1 // pred_region
      %25 = vsyncadd [#allocation6], 0
      %s26 = sshll.u32 %s1, 4
      %s27 = int_to_ptr.hbm [resolvable:$true] %s26
      %s28 = sshll.u32 [#allocation5], 4
      %s29 = int_to_ptr.vmem [resolvable:$true] %s28
      %34 = dma.hbm_to_vmem [thread:$0]  %s27, 65536, %s29, [#allocation6], 1024, 1024, 64
    $region9: #{tpu_custom_call.1} parent=1 // pred_fallthru
      _
    // Predicated region
    $region10: #{tpu_custom_call.1} parent=1 // pred_check
      _
    $region11: #{tpu_custom_call.1} parent=1 // pred_check_branch
      %36 = sbr.rel (0) target = $region13
    $region12: #{tpu_custom_call.1} parent=1 // pred_region
      %38 = vsyncadd [#allocation6], 0
      %s40 = sshll.u32 %s2, 4
      %s41 = int_to_ptr.hbm [resolvable:$true] %s40
      %s42 = sshll.u32 [#allocation7], 4
      %s43 = int_to_ptr.vmem [resolvable:$true] %s42
      %45 = dma.hbm_to_vmem [thread:$0]  %s41, 128, %s43, [#allocation6]
    $region13: #{tpu_custom_call.1} parent=1 // pred_fallthru
      _
    // Predicated region
    $region14: #{tpu_custom_call.1} parent=1 // pred_check
      _
    $region15: #{tpu_custom_call.1} parent=1 // pred_check_branch
      %47 = sbr.rel (0) target = $region17
    $region16: #{tpu_custom_call.1} parent=1 // pred_region
      %49 = dma.done [#allocation3], 512
    $region17: #{tpu_custom_call.1} parent=1 // pred_fallthru
      _
    // Predicated region
    $region18: #{tpu_custom_call.1} parent=1 // pred_check
      _
    $region19: #{tpu_custom_call.1} parent=1 // pred_check_branch
      %51 = sbr.rel (0) target = $region21
    $region20: #{tpu_custom_call.1} parent=1 // pred_region
      %53 = dma.done [#allocation6], 65536
    $region21: #{tpu_custom_call.1} parent=1 // pred_fallthru
      _
    // Predicated region
    $region22: #{tpu_custom_call.1} parent=1 // pred_check
      _
    $region23: #{tpu_custom_call.1} parent=1 // pred_check_branch
      %55 = sbr.rel (0) target = $region25
    $region24: #{tpu_custom_call.1} parent=1 // pred_region
      %57 = dma.done [#allocation6], 128
    $region25: #{tpu_custom_call.1} parent=1 // pred_fallthru
      _
    %v58 = vld [vmem:[#allocation2] sm:$0xff]
    %v59 = vld [vmem:[#allocation2 + $0x8] sm:$0xff]
    %v60 = vld [vmem:[#allocation2 + $0x10] sm:$0xff]
    %v61 = vld [vmem:[#allocation2 + $0x18] sm:$0xff]
    %v62 = vld [vmem:[#allocation5] sm:$0xff]
    %v63 = vld [vmem:[#allocation5 + $0x8] sm:$0xff]
    %v64 = vld [vmem:[#allocation5 + $0x10] sm:$0xff]
    %v65 = vld [vmem:[#allocation5 + $0x18] sm:$0xff]
    %v66 = vld [vmem:[#allocation5 + $0x20] sm:$0xff]
    %v67 = vld [vmem:[#allocation5 + $0x28] sm:$0xff]
    %v68 = vld [vmem:[#allocation5 + $0x30] sm:$0xff]
    %v69 = vld [vmem:[#allocation5 + $0x38] sm:$0xff]
    %v70 = vld [vmem:[#allocation5 + $0x40] sm:$0xff]
    %v71 = vld [vmem:[#allocation5 + $0x48] sm:$0xff]
    %v72 = vld [vmem:[#allocation5 + $0x50] sm:$0xff]
    %v73 = vld [vmem:[#allocation5 + $0x58] sm:$0xff]
    %v74 = vld [vmem:[#allocation5 + $0x60] sm:$0xff]
    %v75 = vld [vmem:[#allocation5 + $0x68] sm:$0xff]
    %v76 = vld [vmem:[#allocation5 + $0x70] sm:$0xff]
    %v77 = vld [vmem:[#allocation5 + $0x78] sm:$0xff]
    %v78 = vld [vmem:[#allocation5 + $0x80] sm:$0xff]
    %v79 = vld [vmem:[#allocation5 + $0x88] sm:$0xff]
    %v80 = vld [vmem:[#allocation5 + $0x90] sm:$0xff]
    %v81 = vld [vmem:[#allocation5 + $0x98] sm:$0xff]
    %v82 = vld [vmem:[#allocation5 + $0xa0] sm:$0xff]
    %v83 = vld [vmem:[#allocation5 + $0xa8] sm:$0xff]
    %v84 = vld [vmem:[#allocation5 + $0xb0] sm:$0xff]
    %v85 = vld [vmem:[#allocation5 + $0xb8] sm:$0xff]
    %v86 = vld [vmem:[#allocation5 + $0xc0] sm:$0xff]
    %v87 = vld [vmem:[#allocation5 + $0xc8] sm:$0xff]
    %v88 = vld [vmem:[#allocation5 + $0xd0] sm:$0xff]
    %v89 = vld [vmem:[#allocation5 + $0xd8] sm:$0xff]
    %v90 = vld [vmem:[#allocation5 + $0xe0] sm:$0xff]
    %v91 = vld [vmem:[#allocation5 + $0xe8] sm:$0xff]
    %v92 = vld [vmem:[#allocation5 + $0xf0] sm:$0xff]
    %v93 = vld [vmem:[#allocation5 + $0xf8] sm:$0xff]
    %v94 = vld [vmem:[#allocation5 + $0x100] sm:$0xff]
    %v95 = vld [vmem:[#allocation5 + $0x108] sm:$0xff]
    %v96 = vld [vmem:[#allocation5 + $0x110] sm:$0xff]
    %v97 = vld [vmem:[#allocation5 + $0x118] sm:$0xff]
    %v98 = vld [vmem:[#allocation5 + $0x120] sm:$0xff]
    %v99 = vld [vmem:[#allocation5 + $0x128] sm:$0xff]
    %v100 = vld [vmem:[#allocation5 + $0x130] sm:$0xff]
    %v101 = vld [vmem:[#allocation5 + $0x138] sm:$0xff]
    %v102 = vld [vmem:[#allocation5 + $0x140] sm:$0xff]
    %v103 = vld [vmem:[#allocation5 + $0x148] sm:$0xff]
    %v104 = vld [vmem:[#allocation5 + $0x150] sm:$0xff]
    %v105 = vld [vmem:[#allocation5 + $0x158] sm:$0xff]
    %v106 = vld [vmem:[#allocation5 + $0x160] sm:$0xff]
    %v107 = vld [vmem:[#allocation5 + $0x168] sm:$0xff]
    %v108 = vld [vmem:[#allocation5 + $0x170] sm:$0xff]
    %v109 = vld [vmem:[#allocation5 + $0x178] sm:$0xff]
    %v110 = vld [vmem:[#allocation5 + $0x180] sm:$0xff]
    %v111 = vld [vmem:[#allocation5 + $0x188] sm:$0xff]
    %v112 = vld [vmem:[#allocation5 + $0x190] sm:$0xff]
    %v113 = vld [vmem:[#allocation5 + $0x198] sm:$0xff]
    %v114 = vld [vmem:[#allocation5 + $0x1a0] sm:$0xff]
    %v115 = vld [vmem:[#allocation5 + $0x1a8] sm:$0xff]
    %v116 = vld [vmem:[#allocation5 + $0x1b0] sm:$0xff]
    %v117 = vld [vmem:[#allocation5 + $0x1b8] sm:$0xff]
    %v118 = vld [vmem:[#allocation5 + $0x1c0] sm:$0xff]
    %v119 = vld [vmem:[#allocation5 + $0x1c8] sm:$0xff]
    %v120 = vld [vmem:[#allocation5 + $0x1d0] sm:$0xff]
    %v121 = vld [vmem:[#allocation5 + $0x1d8] sm:$0xff]
    %v122 = vld [vmem:[#allocation5 + $0x1e0] sm:$0xff]
    %v123 = vld [vmem:[#allocation5 + $0x1e8] sm:$0xff]
    %v124 = vld [vmem:[#allocation5 + $0x1f0] sm:$0xff]
    %v125 = vld [vmem:[#allocation5 + $0x1f8] sm:$0xff]
    %v126 = vld [vmem:[#allocation5 + $0x200] sm:$0xff]
    %v127 = vld [vmem:[#allocation5 + $0x208] sm:$0xff]
    %v128 = vld [vmem:[#allocation5 + $0x210] sm:$0xff]
    %v129 = vld [vmem:[#allocation5 + $0x218] sm:$0xff]
    %v130 = vld [vmem:[#allocation5 + $0x220] sm:$0xff]
    %v131 = vld [vmem:[#allocation5 + $0x228] sm:$0xff]
    %v132 = vld [vmem:[#allocation5 + $0x230] sm:$0xff]
    %v133 = vld [vmem:[#allocation5 + $0x238] sm:$0xff]
    %v134 = vld [vmem:[#allocation5 + $0x240] sm:$0xff]
    %v135 = vld [vmem:[#allocation5 + $0x248] sm:$0xff]
    %v136 = vld [vmem:[#allocation5 + $0x250] sm:$0xff]
    %v137 = vld [vmem:[#allocation5 + $0x258] sm:$0xff]
    %v138 = vld [vmem:[#allocation5 + $0x260] sm:$0xff]
    %v139 = vld [vmem:[#allocation5 + $0x268] sm:$0xff]
    %v140 = vld [vmem:[#allocation5 + $0x270] sm:$0xff]
    %v141 = vld [vmem:[#allocation5 + $0x278] sm:$0xff]
    %v142 = vld [vmem:[#allocation5 + $0x280] sm:$0xff]
    %v143 = vld [vmem:[#allocation5 + $0x288] sm:$0xff]
    %v144 = vld [vmem:[#allocation5 + $0x290] sm:$0xff]
    %v145 = vld [vmem:[#allocation5 + $0x298] sm:$0xff]
    %v146 = vld [vmem:[#allocation5 + $0x2a0] sm:$0xff]
    %v147 = vld [vmem:[#allocation5 + $0x2a8] sm:$0xff]
    %v148 = vld [vmem:[#allocation5 + $0x2b0] sm:$0xff]
    %v149 = vld [vmem:[#allocation5 + $0x2b8] sm:$0xff]
    %v150 = vld [vmem:[#allocation5 + $0x2c0] sm:$0xff]
    %v151 = vld [vmem:[#allocation5 + $0x2c8] sm:$0xff]
    %v152 = vld [vmem:[#allocation5 + $0x2d0] sm:$0xff]
    %v153 = vld [vmem:[#allocation5 + $0x2d8] sm:$0xff]
    %v154 = vld [vmem:[#allocation5 + $0x2e0] sm:$0xff]
    %v155 = vld [vmem:[#allocation5 + $0x2e8] sm:$0xff]
    %v156 = vld [vmem:[#allocation5 + $0x2f0] sm:$0xff]
    %v157 = vld [vmem:[#allocation5 + $0x2f8] sm:$0xff]
    %v158 = vld [vmem:[#allocation5 + $0x300] sm:$0xff]
    %v159 = vld [vmem:[#allocation5 + $0x308] sm:$0xff]
    %v160 = vld [vmem:[#allocation5 + $0x310] sm:$0xff]
    %v161 = vld [vmem:[#allocation5 + $0x318] sm:$0xff]
    %v162 = vld [vmem:[#allocation5 + $0x320] sm:$0xff]
    %v163 = vld [vmem:[#allocation5 + $0x328] sm:$0xff]
    %v164 = vld [vmem:[#allocation5 + $0x330] sm:$0xff]
    %v165 = vld [vmem:[#allocation5 + $0x338] sm:$0xff]
    %v166 = vld [vmem:[#allocation5 + $0x340] sm:$0xff]
    %v167 = vld [vmem:[#allocation5 + $0x348] sm:$0xff]
    %v168 = vld [vmem:[#allocation5 + $0x350] sm:$0xff]
    %v169 = vld [vmem:[#allocation5 + $0x358] sm:$0xff]
    %v170 = vld [vmem:[#allocation5 + $0x360] sm:$0xff]
    %v171 = vld [vmem:[#allocation5 + $0x368] sm:$0xff]
    %v172 = vld [vmem:[#allocation5 + $0x370] sm:$0xff]
    %v173 = vld [vmem:[#allocation5 + $0x378] sm:$0xff]
    %v174 = vld [vmem:[#allocation5 + $0x380] sm:$0xff]
    %v175 = vld [vmem:[#allocation5 + $0x388] sm:$0xff]
    %v176 = vld [vmem:[#allocation5 + $0x390] sm:$0xff]
    %v177 = vld [vmem:[#allocation5 + $0x398] sm:$0xff]
    %v178 = vld [vmem:[#allocation5 + $0x3a0] sm:$0xff]
    %v179 = vld [vmem:[#allocation5 + $0x3a8] sm:$0xff]
    %v180 = vld [vmem:[#allocation5 + $0x3b0] sm:$0xff]
    %v181 = vld [vmem:[#allocation5 + $0x3b8] sm:$0xff]
    %v182 = vld [vmem:[#allocation5 + $0x3c0] sm:$0xff]
    %v183 = vld [vmem:[#allocation5 + $0x3c8] sm:$0xff]
    %v184 = vld [vmem:[#allocation5 + $0x3d0] sm:$0xff]
    %v185 = vld [vmem:[#allocation5 + $0x3d8] sm:$0xff]
    %v186 = vld [vmem:[#allocation5 + $0x3e0] sm:$0xff]
    %v187 = vld [vmem:[#allocation5 + $0x3e8] sm:$0xff]
    %v188 = vld [vmem:[#allocation5 + $0x3f0] sm:$0xff]
    %v189 = vld [vmem:[#allocation5 + $0x3f8] sm:$0xff]
    %v190 = vld [vmem:[#allocation5 + $0x400] sm:$0xff]
    %v191 = vld [vmem:[#allocation5 + $0x408] sm:$0xff]
    %v192 = vld [vmem:[#allocation5 + $0x410] sm:$0xff]
    %v193 = vld [vmem:[#allocation5 + $0x418] sm:$0xff]
    %v194 = vld [vmem:[#allocation5 + $0x420] sm:$0xff]
    %v195 = vld [vmem:[#allocation5 + $0x428] sm:$0xff]
    %v196 = vld [vmem:[#allocation5 + $0x430] sm:$0xff]
    %v197 = vld [vmem:[#allocation5 + $0x438] sm:$0xff]
    %v198 = vld [vmem:[#allocation5 + $0x440] sm:$0xff]
    %v199 = vld [vmem:[#allocation5 + $0x448] sm:$0xff]
    %v200 = vld [vmem:[#allocation5 + $0x450] sm:$0xff]
    %v201 = vld [vmem:[#allocation5 + $0x458] sm:$0xff]
    %v202 = vld [vmem:[#allocation5 + $0x460] sm:$0xff]
    %v203 = vld [vmem:[#allocation5 + $0x468] sm:$0xff]
    %v204 = vld [vmem:[#allocation5 + $0x470] sm:$0xff]
    %v205 = vld [vmem:[#allocation5 + $0x478] sm:$0xff]
    %v206 = vld [vmem:[#allocation5 + $0x480] sm:$0xff]
    %v207 = vld [vmem:[#allocation5 + $0x488] sm:$0xff]
    %v208 = vld [vmem:[#allocation5 + $0x490] sm:$0xff]
    %v209 = vld [vmem:[#allocation5 + $0x498] sm:$0xff]
    %v210 = vld [vmem:[#allocation5 + $0x4a0] sm:$0xff]
    %v211 = vld [vmem:[#allocation5 + $0x4a8] sm:$0xff]
    %v212 = vld [vmem:[#allocation5 + $0x4b0] sm:$0xff]
    %v213 = vld [vmem:[#allocation5 + $0x4b8] sm:$0xff]
    %v214 = vld [vmem:[#allocation5 + $0x4c0] sm:$0xff]
    %v215 = vld [vmem:[#allocation5 + $0x4c8] sm:$0xff]
    %v216 = vld [vmem:[#allocation5 + $0x4d0] sm:$0xff]
    %v217 = vld [vmem:[#allocation5 + $0x4d8] sm:$0xff]
    %v218 = vld [vmem:[#allocation5 + $0x4e0] sm:$0xff]
    %v219 = vld [vmem:[#allocation5 + $0x4e8] sm:$0xff]
    %v220 = vld [vmem:[#allocation5 + $0x4f0] sm:$0xff]
    %v221 = vld [vmem:[#allocation5 + $0x4f8] sm:$0xff]
    %v222 = vld [vmem:[#allocation5 + $0x500] sm:$0xff]
    %v223 = vld [vmem:[#allocation5 + $0x508] sm:$0xff]
    %v224 = vld [vmem:[#allocation5 + $0x510] sm:$0xff]
    %v225 = vld [vmem:[#allocation5 + $0x518] sm:$0xff]
    %v226 = vld [vmem:[#allocation5 + $0x520] sm:$0xff]
    %v227 = vld [vmem:[#allocation5 + $0x528] sm:$0xff]
    %v228 = vld [vmem:[#allocation5 + $0x530] sm:$0xff]
    %v229 = vld [vmem:[#allocation5 + $0x538] sm:$0xff]
    %v230 = vld [vmem:[#allocation5 + $0x540] sm:$0xff]
    %v231 = vld [vmem:[#allocation5 + $0x548] sm:$0xff]
    %v232 = vld [vmem:[#allocation5 + $0x550] sm:$0xff]
    %v233 = vld [vmem:[#allocation5 + $0x558] sm:$0xff]
    %v234 = vld [vmem:[#allocation5 + $0x560] sm:$0xff]
    %v235 = vld [vmem:[#allocation5 + $0x568] sm:$0xff]
    %v236 = vld [vmem:[#allocation5 + $0x570] sm:$0xff]
    %v237 = vld [vmem:[#allocation5 + $0x578] sm:$0xff]
    %v238 = vld [vmem:[#allocation5 + $0x580] sm:$0xff]
    %v239 = vld [vmem:[#allocation5 + $0x588] sm:$0xff]
    %v240 = vld [vmem:[#allocation5 + $0x590] sm:$0xff]
    %v241 = vld [vmem:[#allocation5 + $0x598] sm:$0xff]
    %v242 = vld [vmem:[#allocation5 + $0x5a0] sm:$0xff]
    %v243 = vld [vmem:[#allocation5 + $0x5a8] sm:$0xff]
    %v244 = vld [vmem:[#allocation5 + $0x5b0] sm:$0xff]
    %v245 = vld [vmem:[#allocation5 + $0x5b8] sm:$0xff]
    %v246 = vld [vmem:[#allocation5 + $0x5c0] sm:$0xff]
    %v247 = vld [vmem:[#allocation5 + $0x5c8] sm:$0xff]
    %v248 = vld [vmem:[#allocation5 + $0x5d0] sm:$0xff]
    %v249 = vld [vmem:[#allocation5 + $0x5d8] sm:$0xff]
    %v250 = vld [vmem:[#allocation5 + $0x5e0] sm:$0xff]
    %v251 = vld [vmem:[#allocation5 + $0x5e8] sm:$0xff]
    %v252 = vld [vmem:[#allocation5 + $0x5f0] sm:$0xff]
    %v253 = vld [vmem:[#allocation5 + $0x5f8] sm:$0xff]
    %v254 = vld [vmem:[#allocation5 + $0x600] sm:$0xff]
    %v255 = vld [vmem:[#allocation5 + $0x608] sm:$0xff]
    %v256 = vld [vmem:[#allocation5 + $0x610] sm:$0xff]
    %v257 = vld [vmem:[#allocation5 + $0x618] sm:$0xff]
    %v258 = vld [vmem:[#allocation5 + $0x620] sm:$0xff]
    %v259 = vld [vmem:[#allocation5 + $0x628] sm:$0xff]
    %v260 = vld [vmem:[#allocation5 + $0x630] sm:$0xff]
    %v261 = vld [vmem:[#allocation5 + $0x638] sm:$0xff]
    %v262 = vld [vmem:[#allocation5 + $0x640] sm:$0xff]
    %v263 = vld [vmem:[#allocation5 + $0x648] sm:$0xff]
    %v264 = vld [vmem:[#allocation5 + $0x650] sm:$0xff]
    %v265 = vld [vmem:[#allocation5 + $0x658] sm:$0xff]
    %v266 = vld [vmem:[#allocation5 + $0x660] sm:$0xff]
    %v267 = vld [vmem:[#allocation5 + $0x668] sm:$0xff]
    %v268 = vld [vmem:[#allocation5 + $0x670] sm:$0xff]
    %v269 = vld [vmem:[#allocation5 + $0x678] sm:$0xff]
    %v270 = vld [vmem:[#allocation5 + $0x680] sm:$0xff]
    %v271 = vld [vmem:[#allocation5 + $0x688] sm:$0xff]
    %v272 = vld [vmem:[#allocation5 + $0x690] sm:$0xff]
    %v273 = vld [vmem:[#allocation5 + $0x698] sm:$0xff]
    %v274 = vld [vmem:[#allocation5 + $0x6a0] sm:$0xff]
    %v275 = vld [vmem:[#allocation5 + $0x6a8] sm:$0xff]
    %v276 = vld [vmem:[#allocation5 + $0x6b0] sm:$0xff]
    %v277 = vld [vmem:[#allocation5 + $0x6b8] sm:$0xff]
    %v278 = vld [vmem:[#allocation5 + $0x6c0] sm:$0xff]
    %v279 = vld [vmem:[#allocation5 + $0x6c8] sm:$0xff]
    %v280 = vld [vmem:[#allocation5 + $0x6d0] sm:$0xff]
    %v281 = vld [vmem:[#allocation5 + $0x6d8] sm:$0xff]
    %v282 = vld [vmem:[#allocation5 + $0x6e0] sm:$0xff]
    %v283 = vld [vmem:[#allocation5 + $0x6e8] sm:$0xff]
    %v284 = vld [vmem:[#allocation5 + $0x6f0] sm:$0xff]
    %v285 = vld [vmem:[#allocation5 + $0x6f8] sm:$0xff]
    %v286 = vld [vmem:[#allocation5 + $0x700] sm:$0xff]
    %v287 = vld [vmem:[#allocation5 + $0x708] sm:$0xff]
    %v288 = vld [vmem:[#allocation5 + $0x710] sm:$0xff]
    %v289 = vld [vmem:[#allocation5 + $0x718] sm:$0xff]
    %v290 = vld [vmem:[#allocation5 + $0x720] sm:$0xff]
    %v291 = vld [vmem:[#allocation5 + $0x728] sm:$0xff]
    %v292 = vld [vmem:[#allocation5 + $0x730] sm:$0xff]
    %v293 = vld [vmem:[#allocation5 + $0x738] sm:$0xff]
    %v294 = vld [vmem:[#allocation5 + $0x740] sm:$0xff]
    %v295 = vld [vmem:[#allocation5 + $0x748] sm:$0xff]
    %v296 = vld [vmem:[#allocation5 + $0x750] sm:$0xff]
    %v297 = vld [vmem:[#allocation5 + $0x758] sm:$0xff]
    %v298 = vld [vmem:[#allocation5 + $0x760] sm:$0xff]
    %v299 = vld [vmem:[#allocation5 + $0x768] sm:$0xff]
    %v300 = vld [vmem:[#allocation5 + $0x770] sm:$0xff]
    %v301 = vld [vmem:[#allocation5 + $0x778] sm:$0xff]
    %v302 = vld [vmem:[#allocation5 + $0x780] sm:$0xff]
    %v303 = vld [vmem:[#allocation5 + $0x788] sm:$0xff]
    %v304 = vld [vmem:[#allocation5 + $0x790] sm:$0xff]
    %v305 = vld [vmem:[#allocation5 + $0x798] sm:$0xff]
    %v306 = vld [vmem:[#allocation5 + $0x7a0] sm:$0xff]
    %v307 = vld [vmem:[#allocation5 + $0x7a8] sm:$0xff]
    %v308 = vld [vmem:[#allocation5 + $0x7b0] sm:$0xff]
    %v309 = vld [vmem:[#allocation5 + $0x7b8] sm:$0xff]
    %v310 = vld [vmem:[#allocation5 + $0x7c0] sm:$0xff]
    %v311 = vld [vmem:[#allocation5 + $0x7c8] sm:$0xff]
    %v312 = vld [vmem:[#allocation5 + $0x7d0] sm:$0xff]
    %v313 = vld [vmem:[#allocation5 + $0x7d8] sm:$0xff]
    %v314 = vld [vmem:[#allocation5 + $0x7e0] sm:$0xff]
    %v315 = vld [vmem:[#allocation5 + $0x7e8] sm:$0xff]
    %v316 = vld [vmem:[#allocation5 + $0x7f0] sm:$0xff]
    %v317 = vld [vmem:[#allocation5 + $0x7f8] sm:$0xff]
    %v318 = vld [vmem:[#allocation5 + $0x800] sm:$0xff]
    %v319 = vld [vmem:[#allocation5 + $0x808] sm:$0xff]
    %v320 = vld [vmem:[#allocation5 + $0x810] sm:$0xff]
    %v321 = vld [vmem:[#allocation5 + $0x818] sm:$0xff]
    %v322 = vld [vmem:[#allocation5 + $0x820] sm:$0xff]
    %v323 = vld [vmem:[#allocation5 + $0x828] sm:$0xff]
    %v324 = vld [vmem:[#allocation5 + $0x830] sm:$0xff]
    %v325 = vld [vmem:[#allocation5 + $0x838] sm:$0xff]
    %v326 = vld [vmem:[#allocation5 + $0x840] sm:$0xff]
    %v327 = vld [vmem:[#allocation5 + $0x848] sm:$0xff]
    %v328 = vld [vmem:[#allocation5 + $0x850] sm:$0xff]
    %v329 = vld [vmem:[#allocation5 + $0x858] sm:$0xff]
    %v330 = vld [vmem:[#allocation5 + $0x860] sm:$0xff]
    %v331 = vld [vmem:[#allocation5 + $0x868] sm:$0xff]
    %v332 = vld [vmem:[#allocation5 + $0x870] sm:$0xff]
    %v333 = vld [vmem:[#allocation5 + $0x878] sm:$0xff]
    %v334 = vld [vmem:[#allocation5 + $0x880] sm:$0xff]
    %v335 = vld [vmem:[#allocation5 + $0x888] sm:$0xff]
    %v336 = vld [vmem:[#allocation5 + $0x890] sm:$0xff]
    %v337 = vld [vmem:[#allocation5 + $0x898] sm:$0xff]
    %v338 = vld [vmem:[#allocation5 + $0x8a0] sm:$0xff]
    %v339 = vld [vmem:[#allocation5 + $0x8a8] sm:$0xff]
    %v340 = vld [vmem:[#allocation5 + $0x8b0] sm:$0xff]
    %v341 = vld [vmem:[#allocation5 + $0x8b8] sm:$0xff]
    %v342 = vld [vmem:[#allocation5 + $0x8c0] sm:$0xff]
    %v343 = vld [vmem:[#allocation5 + $0x8c8] sm:$0xff]
    %v344 = vld [vmem:[#allocation5 + $0x8d0] sm:$0xff]
    %v345 = vld [vmem:[#allocation5 + $0x8d8] sm:$0xff]
    %v346 = vld [vmem:[#allocation5 + $0x8e0] sm:$0xff]
    %v347 = vld [vmem:[#allocation5 + $0x8e8] sm:$0xff]
    %v348 = vld [vmem:[#allocation5 + $0x8f0] sm:$0xff]
    %v349 = vld [vmem:[#allocation5 + $0x8f8] sm:$0xff]
    %v350 = vld [vmem:[#allocation5 + $0x900] sm:$0xff]
    %v351 = vld [vmem:[#allocation5 + $0x908] sm:$0xff]
    %v352 = vld [vmem:[#allocation5 + $0x910] sm:$0xff]
    %v353 = vld [vmem:[#allocation5 + $0x918] sm:$0xff]
    %v354 = vld [vmem:[#allocation5 + $0x920] sm:$0xff]
    %v355 = vld [vmem:[#allocation5 + $0x928] sm:$0xff]
    %v356 = vld [vmem:[#allocation5 + $0x930] sm:$0xff]
    %v357 = vld [vmem:[#allocation5 + $0x938] sm:$0xff]
    %v358 = vld [vmem:[#allocation5 + $0x940] sm:$0xff]
    %v359 = vld [vmem:[#allocation5 + $0x948] sm:$0xff]
    %v360 = vld [vmem:[#allocation5 + $0x950] sm:$0xff]
    %v361 = vld [vmem:[#allocation5 + $0x958] sm:$0xff]
    %v362 = vld [vmem:[#allocation5 + $0x960] sm:$0xff]
    %v363 = vld [vmem:[#allocation5 + $0x968] sm:$0xff]
    %v364 = vld [vmem:[#allocation5 + $0x970] sm:$0xff]
    %v365 = vld [vmem:[#allocation5 + $0x978] sm:$0xff]
    %v366 = vld [vmem:[#allocation5 + $0x980] sm:$0xff]
    %v367 = vld [vmem:[#allocation5 + $0x988] sm:$0xff]
    %v368 = vld [vmem:[#allocation5 + $0x990] sm:$0xff]
    %v369 = vld [vmem:[#allocation5 + $0x998] sm:$0xff]
    %v370 = vld [vmem:[#allocation5 + $0x9a0] sm:$0xff]
    %v371 = vld [vmem:[#allocation5 + $0x9a8] sm:$0xff]
    %v372 = vld [vmem:[#allocation5 + $0x9b0] sm:$0xff]
    %v373 = vld [vmem:[#allocation5 + $0x9b8] sm:$0xff]
    %v374 = vld [vmem:[#allocation5 + $0x9c0] sm:$0xff]
    %v375 = vld [vmem:[#allocation5 + $0x9c8] sm:$0xff]
    %v376 = vld [vmem:[#allocation5 + $0x9d0] sm:$0xff]
    %v377 = vld [vmem:[#allocation5 + $0x9d8] sm:$0xff]
    %v378 = vld [vmem:[#allocation5 + $0x9e0] sm:$0xff]
    %v379 = vld [vmem:[#allocation5 + $0x9e8] sm:$0xff]
    %v380 = vld [vmem:[#allocation5 + $0x9f0] sm:$0xff]
    %v381 = vld [vmem:[#allocation5 + $0x9f8] sm:$0xff]
    %v382 = vld [vmem:[#allocation5 + $0xa00] sm:$0xff]
    %v383 = vld [vmem:[#allocation5 + $0xa08] sm:$0xff]
    %v384 = vld [vmem:[#allocation5 + $0xa10] sm:$0xff]
    %v385 = vld [vmem:[#allocation5 + $0xa18] sm:$0xff]
    %v386 = vld [vmem:[#allocation5 + $0xa20] sm:$0xff]
    %v387 = vld [vmem:[#allocation5 + $0xa28] sm:$0xff]
    %v388 = vld [vmem:[#allocation5 + $0xa30] sm:$0xff]
    %v389 = vld [vmem:[#allocation5 + $0xa38] sm:$0xff]
    %v390 = vld [vmem:[#allocation5 + $0xa40] sm:$0xff]
    %v391 = vld [vmem:[#allocation5 + $0xa48] sm:$0xff]
    %v392 = vld [vmem:[#allocation5 + $0xa50] sm:$0xff]
    %v393 = vld [vmem:[#allocation5 + $0xa58] sm:$0xff]
    %v394 = vld [vmem:[#allocation5 + $0xa60] sm:$0xff]
    %v395 = vld [vmem:[#allocation5 + $0xa68] sm:$0xff]
    %v396 = vld [vmem:[#allocation5 + $0xa70] sm:$0xff]
    %v397 = vld [vmem:[#allocation5 + $0xa78] sm:$0xff]
    %v398 = vld [vmem:[#allocation5 + $0xa80] sm:$0xff]
    %v399 = vld [vmem:[#allocation5 + $0xa88] sm:$0xff]
    %v400 = vld [vmem:[#allocation5 + $0xa90] sm:$0xff]
    %v401 = vld [vmem:[#allocation5 + $0xa98] sm:$0xff]
    %v402 = vld [vmem:[#allocation5 + $0xaa0] sm:$0xff]
    %v403 = vld [vmem:[#allocation5 + $0xaa8] sm:$0xff]
    %v404 = vld [vmem:[#allocation5 + $0xab0] sm:$0xff]
    %v405 = vld [vmem:[#allocation5 + $0xab8] sm:$0xff]
    %v406 = vld [vmem:[#allocation5 + $0xac0] sm:$0xff]
    %v407 = vld [vmem:[#allocation5 + $0xac8] sm:$0xff]
    %v408 = vld [vmem:[#allocation5 + $0xad0] sm:$0xff]
    %v409 = vld [vmem:[#allocation5 + $0xad8] sm:$0xff]
    %v410 = vld [vmem:[#allocation5 + $0xae0] sm:$0xff]
    %v411 = vld [vmem:[#allocation5 + $0xae8] sm:$0xff]
    %v412 = vld [vmem:[#allocation5 + $0xaf0] sm:$0xff]
    %v413 = vld [vmem:[#allocation5 + $0xaf8] sm:$0xff]
    %v414 = vld [vmem:[#allocation5 + $0xb00] sm:$0xff]
    %v415 = vld [vmem:[#allocation5 + $0xb08] sm:$0xff]
    %v416 = vld [vmem:[#allocation5 + $0xb10] sm:$0xff]
    %v417 = vld [vmem:[#allocation5 + $0xb18] sm:$0xff]
    %v418 = vld [vmem:[#allocation5 + $0xb20] sm:$0xff]
    %v419 = vld [vmem:[#allocation5 + $0xb28] sm:$0xff]
    %v420 = vld [vmem:[#allocation5 + $0xb30] sm:$0xff]
    %v421 = vld [vmem:[#allocation5 + $0xb38] sm:$0xff]
    %v422 = vld [vmem:[#allocation5 + $0xb40] sm:$0xff]
    %v423 = vld [vmem:[#allocation5 + $0xb48] sm:$0xff]
    %v424 = vld [vmem:[#allocation5 + $0xb50] sm:$0xff]
    %v425 = vld [vmem:[#allocation5 + $0xb58] sm:$0xff]
    %v426 = vld [vmem:[#allocation5 + $0xb60] sm:$0xff]
    %v427 = vld [vmem:[#allocation5 + $0xb68] sm:$0xff]
    %v428 = vld [vmem:[#allocation5 + $0xb70] sm:$0xff]
    %v429 = vld [vmem:[#allocation5 + $0xb78] sm:$0xff]
    %v430 = vld [vmem:[#allocation5 + $0xb80] sm:$0xff]
    %v431 = vld [vmem:[#allocation5 + $0xb88] sm:$0xff]
    %v432 = vld [vmem:[#allocation5 + $0xb90] sm:$0xff]
    %v433 = vld [vmem:[#allocation5 + $0xb98] sm:$0xff]
    %v434 = vld [vmem:[#allocation5 + $0xba0] sm:$0xff]
    %v435 = vld [vmem:[#allocation5 + $0xba8] sm:$0xff]
    %v436 = vld [vmem:[#allocation5 + $0xbb0] sm:$0xff]
    %v437 = vld [vmem:[#allocation5 + $0xbb8] sm:$0xff]
    %v438 = vld [vmem:[#allocation5 + $0xbc0] sm:$0xff]
    %v439 = vld [vmem:[#allocation5 + $0xbc8] sm:$0xff]
    %v440 = vld [vmem:[#allocation5 + $0xbd0] sm:$0xff]
    %v441 = vld [vmem:[#allocation5 + $0xbd8] sm:$0xff]
    %v442 = vld [vmem:[#allocation5 + $0xbe0] sm:$0xff]
    %v443 = vld [vmem:[#allocation5 + $0xbe8] sm:$0xff]
    %v444 = vld [vmem:[#allocation5 + $0xbf0] sm:$0xff]
    %v445 = vld [vmem:[#allocation5 + $0xbf8] sm:$0xff]
    %v446 = vld [vmem:[#allocation5 + $0xc00] sm:$0xff]
    %v447 = vld [vmem:[#allocation5 + $0xc08] sm:$0xff]
    %v448 = vld [vmem:[#allocation5 + $0xc10] sm:$0xff]
    %v449 = vld [vmem:[#allocation5 + $0xc18] sm:$0xff]
    %v450 = vld [vmem:[#allocation5 + $0xc20] sm:$0xff]
    %v451 = vld [vmem:[#allocation5 + $0xc28] sm:$0xff]
    %v452 = vld [vmem:[#allocation5 + $0xc30] sm:$0xff]
    %v453 = vld [vmem:[#allocation5 + $0xc38] sm:$0xff]
    %v454 = vld [vmem:[#allocation5 + $0xc40] sm:$0xff]
    %v455 = vld [vmem:[#allocation5 + $0xc48] sm:$0xff]
    %v456 = vld [vmem:[#allocation5 + $0xc50] sm:$0xff]
    %v457 = vld [vmem:[#allocation5 + $0xc58] sm:$0xff]
    %v458 = vld [vmem:[#allocation5 + $0xc60] sm:$0xff]
    %v459 = vld [vmem:[#allocation5 + $0xc68] sm:$0xff]
    %v460 = vld [vmem:[#allocation5 + $0xc70] sm:$0xff]
    %v461 = vld [vmem:[#allocation5 + $0xc78] sm:$0xff]
    %v462 = vld [vmem:[#allocation5 + $0xc80] sm:$0xff]
    %v463 = vld [vmem:[#allocation5 + $0xc88] sm:$0xff]
    %v464 = vld [vmem:[#allocation5 + $0xc90] sm:$0xff]
    %v465 = vld [vmem:[#allocation5 + $0xc98] sm:$0xff]
    %v466 = vld [vmem:[#allocation5 + $0xca0] sm:$0xff]
    %v467 = vld [vmem:[#allocation5 + $0xca8] sm:$0xff]
    %v468 = vld [vmem:[#allocation5 + $0xcb0] sm:$0xff]
    %v469 = vld [vmem:[#allocation5 + $0xcb8] sm:$0xff]
    %v470 = vld [vmem:[#allocation5 + $0xcc0] sm:$0xff]
    %v471 = vld [vmem:[#allocation5 + $0xcc8] sm:$0xff]
    %v472 = vld [vmem:[#allocation5 + $0xcd0] sm:$0xff]
    %v473 = vld [vmem:[#allocation5 + $0xcd8] sm:$0xff]
    %v474 = vld [vmem:[#allocation5 + $0xce0] sm:$0xff]
    %v475 = vld [vmem:[#allocation5 + $0xce8] sm:$0xff]
    %v476 = vld [vmem:[#allocation5 + $0xcf0] sm:$0xff]
    %v477 = vld [vmem:[#allocation5 + $0xcf8] sm:$0xff]
    %v478 = vld [vmem:[#allocation5 + $0xd00] sm:$0xff]
    %v479 = vld [vmem:[#allocation5 + $0xd08] sm:$0xff]
    %v480 = vld [vmem:[#allocation5 + $0xd10] sm:$0xff]
    %v481 = vld [vmem:[#allocation5 + $0xd18] sm:$0xff]
    %v482 = vld [vmem:[#allocation5 + $0xd20] sm:$0xff]
    %v483 = vld [vmem:[#allocation5 + $0xd28] sm:$0xff]
    %v484 = vld [vmem:[#allocation5 + $0xd30] sm:$0xff]
    %v485 = vld [vmem:[#allocation5 + $0xd38] sm:$0xff]
    %v486 = vld [vmem:[#allocation5 + $0xd40] sm:$0xff]
    %v487 = vld [vmem:[#allocation5 + $0xd48] sm:$0xff]
    %v488 = vld [vmem:[#allocation5 + $0xd50] sm:$0xff]
    %v489 = vld [vmem:[#allocation5 + $0xd58] sm:$0xff]
    %v490 = vld [vmem:[#allocation5 + $0xd60] sm:$0xff]
    %v491 = vld [vmem:[#allocation5 + $0xd68] sm:$0xff]
    %v492 = vld [vmem:[#allocation5 + $0xd70] sm:$0xff]
    %v493 = vld [vmem:[#allocation5 + $0xd78] sm:$0xff]
    %v494 = vld [vmem:[#allocation5 + $0xd80] sm:$0xff]
    %v495 = vld [vmem:[#allocation5 + $0xd88] sm:$0xff]
    %v496 = vld [vmem:[#allocation5 + $0xd90] sm:$0xff]
    %v497 = vld [vmem:[#allocation5 + $0xd98] sm:$0xff]
    %v498 = vld [vmem:[#allocation5 + $0xda0] sm:$0xff]
    %v499 = vld [vmem:[#allocation5 + $0xda8] sm:$0xff]
    %v500 = vld [vmem:[#allocation5 + $0xdb0] sm:$0xff]
    %v501 = vld [vmem:[#allocation5 + $0xdb8] sm:$0xff]
    %v502 = vld [vmem:[#allocation5 + $0xdc0] sm:$0xff]
    %v503 = vld [vmem:[#allocation5 + $0xdc8] sm:$0xff]
    %v504 = vld [vmem:[#allocation5 + $0xdd0] sm:$0xff]
    %v505 = vld [vmem:[#allocation5 + $0xdd8] sm:$0xff]
    %v506 = vld [vmem:[#allocation5 + $0xde0] sm:$0xff]
    %v507 = vld [vmem:[#allocation5 + $0xde8] sm:$0xff]
    %v508 = vld [vmem:[#allocation5 + $0xdf0] sm:$0xff]
    %v509 = vld [vmem:[#allocation5 + $0xdf8] sm:$0xff]
    %v510 = vld [vmem:[#allocation5 + $0xe00] sm:$0xff]
    %v511 = vld [vmem:[#allocation5 + $0xe08] sm:$0xff]
    %v512 = vld [vmem:[#allocation5 + $0xe10] sm:$0xff]
    %v513 = vld [vmem:[#allocation5 + $0xe18] sm:$0xff]
    %v514 = vld [vmem:[#allocation5 + $0xe20] sm:$0xff]
    %v515 = vld [vmem:[#allocation5 + $0xe28] sm:$0xff]
    %v516 = vld [vmem:[#allocation5 + $0xe30] sm:$0xff]
    %v517 = vld [vmem:[#allocation5 + $0xe38] sm:$0xff]
    %v518 = vld [vmem:[#allocation5 + $0xe40] sm:$0xff]
    %v519 = vld [vmem:[#allocation5 + $0xe48] sm:$0xff]
    %v520 = vld [vmem:[#allocation5 + $0xe50] sm:$0xff]
    %v521 = vld [vmem:[#allocation5 + $0xe58] sm:$0xff]
    %v522 = vld [vmem:[#allocation5 + $0xe60] sm:$0xff]
    %v523 = vld [vmem:[#allocation5 + $0xe68] sm:$0xff]
    %v524 = vld [vmem:[#allocation5 + $0xe70] sm:$0xff]
    %v525 = vld [vmem:[#allocation5 + $0xe78] sm:$0xff]
    %v526 = vld [vmem:[#allocation5 + $0xe80] sm:$0xff]
    %v527 = vld [vmem:[#allocation5 + $0xe88] sm:$0xff]
    %v528 = vld [vmem:[#allocation5 + $0xe90] sm:$0xff]
    %v529 = vld [vmem:[#allocation5 + $0xe98] sm:$0xff]
    %v530 = vld [vmem:[#allocation5 + $0xea0] sm:$0xff]
    %v531 = vld [vmem:[#allocation5 + $0xea8] sm:$0xff]
    %v532 = vld [vmem:[#allocation5 + $0xeb0] sm:$0xff]
    %v533 = vld [vmem:[#allocation5 + $0xeb8] sm:$0xff]
    %v534 = vld [vmem:[#allocation5 + $0xec0] sm:$0xff]
    %v535 = vld [vmem:[#allocation5 + $0xec8] sm:$0xff]
    %v536 = vld [vmem:[#allocation5 + $0xed0] sm:$0xff]
    %v537 = vld [vmem:[#allocation5 + $0xed8] sm:$0xff]
    %v538 = vld [vmem:[#allocation5 + $0xee0] sm:$0xff]
    %v539 = vld [vmem:[#allocation5 + $0xee8] sm:$0xff]
    %v540 = vld [vmem:[#allocation5 + $0xef0] sm:$0xff]
    %v541 = vld [vmem:[#allocation5 + $0xef8] sm:$0xff]
    %v542 = vld [vmem:[#allocation5 + $0xf00] sm:$0xff]
    %v543 = vld [vmem:[#allocation5 + $0xf08] sm:$0xff]
    %v544 = vld [vmem:[#allocation5 + $0xf10] sm:$0xff]
    %v545 = vld [vmem:[#allocation5 + $0xf18] sm:$0xff]
    %v546 = vld [vmem:[#allocation5 + $0xf20] sm:$0xff]
    %v547 = vld [vmem:[#allocation5 + $0xf28] sm:$0xff]
    %v548 = vld [vmem:[#allocation5 + $0xf30] sm:$0xff]
    %v549 = vld [vmem:[#allocation5 + $0xf38] sm:$0xff]
    %v550 = vld [vmem:[#allocation5 + $0xf40] sm:$0xff]
    %v551 = vld [vmem:[#allocation5 + $0xf48] sm:$0xff]
    %v552 = vld [vmem:[#allocation5 + $0xf50] sm:$0xff]
    %v553 = vld [vmem:[#allocation5 + $0xf58] sm:$0xff]
    %v554 = vld [vmem:[#allocation5 + $0xf60] sm:$0xff]
    %v555 = vld [vmem:[#allocation5 + $0xf68] sm:$0xff]
    %v556 = vld [vmem:[#allocation5 + $0xf70] sm:$0xff]
    %v557 = vld [vmem:[#allocation5 + $0xf78] sm:$0xff]
    %v558 = vld [vmem:[#allocation5 + $0xf80] sm:$0xff]
    %v559 = vld [vmem:[#allocation5 + $0xf88] sm:$0xff]
    %v560 = vld [vmem:[#allocation5 + $0xf90] sm:$0xff]
    %v561 = vld [vmem:[#allocation5 + $0xf98] sm:$0xff]
    %v562 = vld [vmem:[#allocation5 + $0xfa0] sm:$0xff]
    %v563 = vld [vmem:[#allocation5 + $0xfa8] sm:$0xff]
    %v564 = vld [vmem:[#allocation5 + $0xfb0] sm:$0xff]
    %v565 = vld [vmem:[#allocation5 + $0xfb8] sm:$0xff]
    %v566 = vld [vmem:[#allocation5 + $0xfc0] sm:$0xff]
    %v567 = vld [vmem:[#allocation5 + $0xfc8] sm:$0xff]
    %v568 = vld [vmem:[#allocation5 + $0xfd0] sm:$0xff]
    %v569 = vld [vmem:[#allocation5 + $0xfd8] sm:$0xff]
    %v570 = vld [vmem:[#allocation5 + $0xfe0] sm:$0xff]
    %v571 = vld [vmem:[#allocation5 + $0xfe8] sm:$0xff]
    %v572 = vld [vmem:[#allocation5 + $0xff0] sm:$0xff]
    %v573 = vld [vmem:[#allocation5 + $0xff8] sm:$0xff]
    %v574 = vld [vmem:[#allocation7] sm:$0xff]
    %v576 = vperm.slane %v574, 0
    %v577 = vperm.slane %v574, 1
    %v578 = vperm.slane %v574, 2
    %v579 = vperm.slane %v574, 3
    %v580 = vperm.slane %v574, 4
    %v581 = vperm.slane %v574, 5
    %v582 = vperm.slane %v574, 6
    %v583 = vperm.slane %v574, 7
    %592 = vmatpush.msra.mxu0 %v182
    %593 = vmatpush.msra.mxu0 %v174
    %594 = vmatpush.msra.mxu0 %v166
    %595 = vmatpush.msra.mxu0 %v158
    %596 = vmatpush.msra.mxu0 %v150
    %597 = vmatpush.msra.mxu0 %v142
    %598 = vmatpush.msra.mxu0 %v134
    %599 = vmatpush.msra.mxu0 %v126
    %600 = vmatpush.msra.mxu0 %v118
    %601 = vmatpush.msra.mxu0 %v110
    %602 = vmatpush.msra.mxu0 %v102
    %603 = vmatpush.msra.mxu0 %v94
    %604 = vmatpush.msra.mxu0 %v86
    %605 = vmatpush.msra.mxu0 %v78
    %606 = vmatpush.msra.mxu0 %v70
    %607 = vmatpush.msra.mxu0 %v62
    %608 = vmatmul.f32.gmra.mxu0 %v58
    %v609 = vpop.f32.mrf.mxu0
    %v610 = vadd.f32 %v576, %v609
    %611 = vdwg.mxu0
    %612 = vmatpush.msra.mxu0 %v310
    %613 = vmatpush.msra.mxu0 %v302
    %614 = vmatpush.msra.mxu0 %v294
    %615 = vmatpush.msra.mxu0 %v286
    %616 = vmatpush.msra.mxu0 %v278
    %617 = vmatpush.msra.mxu0 %v270
    %618 = vmatpush.msra.mxu0 %v262
    %619 = vmatpush.msra.mxu0 %v254
    %620 = vmatpush.msra.mxu0 %v246
    %621 = vmatpush.msra.mxu0 %v238
    %622 = vmatpush.msra.mxu0 %v230
    %623 = vmatpush.msra.mxu0 %v222
    %624 = vmatpush.msra.mxu0 %v214
    %625 = vmatpush.msra.mxu0 %v206
    %626 = vmatpush.msra.mxu0 %v198
    %627 = vmatpush.msra.mxu0 %v190
    %628 = vmatmul.f32.gmra.mxu0 %v59
    %v629 = vpop.f32.mrf.mxu0
    %v630 = vadd.f32 %v610, %v629
    %631 = vdwg.mxu0
    %632 = vmatpush.msra.mxu0 %v438
    %633 = vmatpush.msra.mxu0 %v430
    %634 = vmatpush.msra.mxu0 %v422
    %635 = vmatpush.msra.mxu0 %v414
    %636 = vmatpush.msra.mxu0 %v406
    %637 = vmatpush.msra.mxu0 %v398
    %638 = vmatpush.msra.mxu0 %v390
    %639 = vmatpush.msra.mxu0 %v382
    %640 = vmatpush.msra.mxu0 %v374
    %641 = vmatpush.msra.mxu0 %v366
    %642 = vmatpush.msra.mxu0 %v358
    %643 = vmatpush.msra.mxu0 %v350
    %644 = vmatpush.msra.mxu0 %v342
    %645 = vmatpush.msra.mxu0 %v334
    %646 = vmatpush.msra.mxu0 %v326
    %647 = vmatpush.msra.mxu0 %v318
    %648 = vmatmul.f32.gmra.mxu0 %v60
    %v649 = vpop.f32.mrf.mxu0
    %v650 = vadd.f32 %v630, %v649
    %651 = vdwg.mxu0
    %652 = vmatpush.msra.mxu0 %v566
    %653 = vmatpush.msra.mxu0 %v558
    %654 = vmatpush.msra.mxu0 %v550
    %655 = vmatpush.msra.mxu0 %v542
    %656 = vmatpush.msra.mxu0 %v534
    %657 = vmatpush.msra.mxu0 %v526
    %658 = vmatpush.msra.mxu0 %v518
    %659 = vmatpush.msra.mxu0 %v510
    %660 = vmatpush.msra.mxu0 %v502
    %661 = vmatpush.msra.mxu0 %v494
    %662 = vmatpush.msra.mxu0 %v486
    %663 = vmatpush.msra.mxu0 %v478
    %664 = vmatpush.msra.mxu0 %v470
    %665 = vmatpush.msra.mxu0 %v462
    %666 = vmatpush.msra.mxu0 %v454
    %667 = vmatpush.msra.mxu0 %v446
    %668 = vmatmul.f32.gmra.mxu0 %v61
    %v669 = vpop.f32.mrf.mxu0
    %v670 = vadd.f32 %v650, %v669
    %671 = vdwg.mxu0
    %672 = vmatpush.msra.mxu0 %v183
    %673 = vmatpush.msra.mxu0 %v175
    %674 = vmatpush.msra.mxu0 %v167
    %675 = vmatpush.msra.mxu0 %v159
    %676 = vmatpush.msra.mxu0 %v151
    %677 = vmatpush.msra.mxu0 %v143
    %678 = vmatpush.msra.mxu0 %v135
    %679 = vmatpush.msra.mxu0 %v127
    %680 = vmatpush.msra.mxu0 %v119
    %681 = vmatpush.msra.mxu0 %v111
    %682 = vmatpush.msra.mxu0 %v103
    %683 = vmatpush.msra.mxu0 %v95
    %684 = vmatpush.msra.mxu0 %v87
    %685 = vmatpush.msra.mxu0 %v79
    %686 = vmatpush.msra.mxu0 %v71
    %687 = vmatpush.msra.mxu0 %v63
    %688 = vmatmul.f32.gmra.mxu0 %v58
    %v689 = vpop.f32.mrf.mxu0
    %v690 = vadd.f32 %v577, %v689
    %691 = vdwg.mxu0
    %692 = vmatpush.msra.mxu0 %v311
    %693 = vmatpush.msra.mxu0 %v303
    %694 = vmatpush.msra.mxu0 %v295
    %695 = vmatpush.msra.mxu0 %v287
    %696 = vmatpush.msra.mxu0 %v279
    %697 = vmatpush.msra.mxu0 %v271
    %698 = vmatpush.msra.mxu0 %v263
    %699 = vmatpush.msra.mxu0 %v255
    %700 = vmatpush.msra.mxu0 %v247
    %701 = vmatpush.msra.mxu0 %v239
    %702 = vmatpush.msra.mxu0 %v231
    %703 = vmatpush.msra.mxu0 %v223
    %704 = vmatpush.msra.mxu0 %v215
    %705 = vmatpush.msra.mxu0 %v207
    %706 = vmatpush.msra.mxu0 %v199
    %707 = vmatpush.msra.mxu0 %v191
    %708 = vmatmul.f32.gmra.mxu0 %v59
    %v709 = vpop.f32.mrf.mxu0
    %v710 = vadd.f32 %v690, %v709
    %711 = vdwg.mxu0
    %712 = vmatpush.msra.mxu0 %v439
    %713 = vmatpush.msra.mxu0 %v431
    %714 = vmatpush.msra.mxu0 %v423
    %715 = vmatpush.msra.mxu0 %v415
    %716 = vmatpush.msra.mxu0 %v407
    %717 = vmatpush.msra.mxu0 %v399
    %718 = vmatpush.msra.mxu0 %v391
    %719 = vmatpush.msra.mxu0 %v383
    %720 = vmatpush.msra.mxu0 %v375
    %721 = vmatpush.msra.mxu0 %v367
    %722 = vmatpush.msra.mxu0 %v359
    %723 = vmatpush.msra.mxu0 %v351
    %724 = vmatpush.msra.mxu0 %v343
    %725 = vmatpush.msra.mxu0 %v335
    %726 = vmatpush.msra.mxu0 %v327
    %727 = vmatpush.msra.mxu0 %v319
    %728 = vmatmul.f32.gmra.mxu0 %v60
    %v729 = vpop.f32.mrf.mxu0
    %v730 = vadd.f32 %v710, %v729
    %731 = vdwg.mxu0
    %732 = vmatpush.msra.mxu0 %v567
    %733 = vmatpush.msra.mxu0 %v559
    %734 = vmatpush.msra.mxu0 %v551
    %735 = vmatpush.msra.mxu0 %v543
    %736 = vmatpush.msra.mxu0 %v535
    %737 = vmatpush.msra.mxu0 %v527
    %738 = vmatpush.msra.mxu0 %v519
    %739 = vmatpush.msra.mxu0 %v511
    %740 = vmatpush.msra.mxu0 %v503
    %741 = vmatpush.msra.mxu0 %v495
    %742 = vmatpush.msra.mxu0 %v487
    %743 = vmatpush.msra.mxu0 %v479
    %744 = vmatpush.msra.mxu0 %v471
    %745 = vmatpush.msra.mxu0 %v463
    %746 = vmatpush.msra.mxu0 %v455
    %747 = vmatpush.msra.mxu0 %v447
    %748 = vmatmul.f32.gmra.mxu0 %v61
    %v749 = vpop.f32.mrf.mxu0
    %v750 = vadd.f32 %v730, %v749
    %751 = vdwg.mxu0
    %752 = vmatpush.msra.mxu0 %v184
    %753 = vmatpush.msra.mxu0 %v176
    %754 = vmatpush.msra.mxu0 %v168
    %755 = vmatpush.msra.mxu0 %v160
    %756 = vmatpush.msra.mxu0 %v152
    %757 = vmatpush.msra.mxu0 %v144
    %758 = vmatpush.msra.mxu0 %v136
    %759 = vmatpush.msra.mxu0 %v128
    %760 = vmatpush.msra.mxu0 %v120
    %761 = vmatpush.msra.mxu0 %v112
    %762 = vmatpush.msra.mxu0 %v104
    %763 = vmatpush.msra.mxu0 %v96
    %764 = vmatpush.msra.mxu0 %v88
    %765 = vmatpush.msra.mxu0 %v80
    %766 = vmatpush.msra.mxu0 %v72
    %767 = vmatpush.msra.mxu0 %v64
    %768 = vmatmul.f32.gmra.mxu0 %v58
    %v769 = vpop.f32.mrf.mxu0
    %v770 = vadd.f32 %v578, %v769
    %771 = vdwg.mxu0
    %772 = vmatpush.msra.mxu0 %v312
    %773 = vmatpush.msra.mxu0 %v304
    %774 = vmatpush.msra.mxu0 %v296
    %775 = vmatpush.msra.mxu0 %v288
    %776 = vmatpush.msra.mxu0 %v280
    %777 = vmatpush.msra.mxu0 %v272
    %778 = vmatpush.msra.mxu0 %v264
    %779 = vmatpush.msra.mxu0 %v256
    %780 = vmatpush.msra.mxu0 %v248
    %781 = vmatpush.msra.mxu0 %v240
    %782 = vmatpush.msra.mxu0 %v232
    %783 = vmatpush.msra.mxu0 %v224
    %784 = vmatpush.msra.mxu0 %v216
    %785 = vmatpush.msra.mxu0 %v208
    %786 = vmatpush.msra.mxu0 %v200
    %787 = vmatpush.msra.mxu0 %v192
    %788 = vmatmul.f32.gmra.mxu0 %v59
    %v789 = vpop.f32.mrf.mxu0
    %v790 = vadd.f32 %v770, %v789
    %791 = vdwg.mxu0
    %792 = vmatpush.msra.mxu0 %v440
    %793 = vmatpush.msra.mxu0 %v432
    %794 = vmatpush.msra.mxu0 %v424
    %795 = vmatpush.msra.mxu0 %v416
    %796 = vmatpush.msra.mxu0 %v408
    %797 = vmatpush.msra.mxu0 %v400
    %798 = vmatpush.msra.mxu0 %v392
    %799 = vmatpush.msra.mxu0 %v384
    %800 = vmatpush.msra.mxu0 %v376
    %801 = vmatpush.msra.mxu0 %v368
    %802 = vmatpush.msra.mxu0 %v360
    %803 = vmatpush.msra.mxu0 %v352
    %804 = vmatpush.msra.mxu0 %v344
    %805 = vmatpush.msra.mxu0 %v336
    %806 = vmatpush.msra.mxu0 %v328
    %807 = vmatpush.msra.mxu0 %v320
    %808 = vmatmul.f32.gmra.mxu0 %v60
    %v809 = vpop.f32.mrf.mxu0
    %v810 = vadd.f32 %v790, %v809
    %811 = vdwg.mxu0
    %812 = vmatpush.msra.mxu0 %v568
    %813 = vmatpush.msra.mxu0 %v560
    %814 = vmatpush.msra.mxu0 %v552
    %815 = vmatpush.msra.mxu0 %v544
    %816 = vmatpush.msra.mxu0 %v536
    %817 = vmatpush.msra.mxu0 %v528
    %818 = vmatpush.msra.mxu0 %v520
    %819 = vmatpush.msra.mxu0 %v512
    %820 = vmatpush.msra.mxu0 %v504
    %821 = vmatpush.msra.mxu0 %v496
    %822 = vmatpush.msra.mxu0 %v488
    %823 = vmatpush.msra.mxu0 %v480
    %824 = vmatpush.msra.mxu0 %v472
    %825 = vmatpush.msra.mxu0 %v464
    %826 = vmatpush.msra.mxu0 %v456
    %827 = vmatpush.msra.mxu0 %v448
    %828 = vmatmul.f32.gmra.mxu0 %v61
    %v829 = vpop.f32.mrf.mxu0
    %v830 = vadd.f32 %v810, %v829
    %831 = vdwg.mxu0
    %832 = vmatpush.msra.mxu0 %v185
    %833 = vmatpush.msra.mxu0 %v177
    %834 = vmatpush.msra.mxu0 %v169
    %835 = vmatpush.msra.mxu0 %v161
    %836 = vmatpush.msra.mxu0 %v153
    %837 = vmatpush.msra.mxu0 %v145
    %838 = vmatpush.msra.mxu0 %v137
    %839 = vmatpush.msra.mxu0 %v129
    %840 = vmatpush.msra.mxu0 %v121
    %841 = vmatpush.msra.mxu0 %v113
    %842 = vmatpush.msra.mxu0 %v105
    %843 = vmatpush.msra.mxu0 %v97
    %844 = vmatpush.msra.mxu0 %v89
    %845 = vmatpush.msra.mxu0 %v81
    %846 = vmatpush.msra.mxu0 %v73
    %847 = vmatpush.msra.mxu0 %v65
    %848 = vmatmul.f32.gmra.mxu0 %v58
    %v849 = vpop.f32.mrf.mxu0
    %v850 = vadd.f32 %v579, %v849
    %851 = vdwg.mxu0
    %852 = vmatpush.msra.mxu0 %v313
    %853 = vmatpush.msra.mxu0 %v305
    %854 = vmatpush.msra.mxu0 %v297
    %855 = vmatpush.msra.mxu0 %v289
    %856 = vmatpush.msra.mxu0 %v281
    %857 = vmatpush.msra.mxu0 %v273
    %858 = vmatpush.msra.mxu0 %v265
    %859 = vmatpush.msra.mxu0 %v257
    %860 = vmatpush.msra.mxu0 %v249
    %861 = vmatpush.msra.mxu0 %v241
    %862 = vmatpush.msra.mxu0 %v233
    %863 = vmatpush.msra.mxu0 %v225
    %864 = vmatpush.msra.mxu0 %v217
    %865 = vmatpush.msra.mxu0 %v209
    %866 = vmatpush.msra.mxu0 %v201
    %867 = vmatpush.msra.mxu0 %v193
    %868 = vmatmul.f32.gmra.mxu0 %v59
    %v869 = vpop.f32.mrf.mxu0
    %v870 = vadd.f32 %v850, %v869
    %871 = vdwg.mxu0
    %872 = vmatpush.msra.mxu0 %v441
    %873 = vmatpush.msra.mxu0 %v433
    %874 = vmatpush.msra.mxu0 %v425
    %875 = vmatpush.msra.mxu0 %v417
    %876 = vmatpush.msra.mxu0 %v409
    %877 = vmatpush.msra.mxu0 %v401
    %878 = vmatpush.msra.mxu0 %v393
    %879 = vmatpush.msra.mxu0 %v385
    %880 = vmatpush.msra.mxu0 %v377
    %881 = vmatpush.msra.mxu0 %v369
    %882 = vmatpush.msra.mxu0 %v361
    %883 = vmatpush.msra.mxu0 %v353
    %884 = vmatpush.msra.mxu0 %v345
    %885 = vmatpush.msra.mxu0 %v337
    %886 = vmatpush.msra.mxu0 %v329
    %887 = vmatpush.msra.mxu0 %v321
    %888 = vmatmul.f32.gmra.mxu0 %v60
    %v889 = vpop.f32.mrf.mxu0
    %v890 = vadd.f32 %v870, %v889
    %891 = vdwg.mxu0
    %892 = vmatpush.msra.mxu0 %v569
    %893 = vmatpush.msra.mxu0 %v561
    %894 = vmatpush.msra.mxu0 %v553
    %895 = vmatpush.msra.mxu0 %v545
    %896 = vmatpush.msra.mxu0 %v537
    %897 = vmatpush.msra.mxu0 %v529
    %898 = vmatpush.msra.mxu0 %v521
    %899 = vmatpush.msra.mxu0 %v513
    %900 = vmatpush.msra.mxu0 %v505
    %901 = vmatpush.msra.mxu0 %v497
    %902 = vmatpush.msra.mxu0 %v489
    %903 = vmatpush.msra.mxu0 %v481
    %904 = vmatpush.msra.mxu0 %v473
    %905 = vmatpush.msra.mxu0 %v465
    %906 = vmatpush.msra.mxu0 %v457
    %907 = vmatpush.msra.mxu0 %v449
    %908 = vmatmul.f32.gmra.mxu0 %v61
    %v909 = vpop.f32.mrf.mxu0
    %v910 = vadd.f32 %v890, %v909
    %911 = vdwg.mxu0
    %912 = vmatpush.msra.mxu0 %v186
    %913 = vmatpush.msra.mxu0 %v178
    %914 = vmatpush.msra.mxu0 %v170
    %915 = vmatpush.msra.mxu0 %v162
    %916 = vmatpush.msra.mxu0 %v154
    %917 = vmatpush.msra.mxu0 %v146
    %918 = vmatpush.msra.mxu0 %v138
    %919 = vmatpush.msra.mxu0 %v130
    %920 = vmatpush.msra.mxu0 %v122
    %921 = vmatpush.msra.mxu0 %v114
    %922 = vmatpush.msra.mxu0 %v106
    %923 = vmatpush.msra.mxu0 %v98
    %924 = vmatpush.msra.mxu0 %v90
    %925 = vmatpush.msra.mxu0 %v82
    %926 = vmatpush.msra.mxu0 %v74
    %927 = vmatpush.msra.mxu0 %v66
    %928 = vmatmul.f32.gmra.mxu0 %v58
    %v929 = vpop.f32.mrf.mxu0
    %v930 = vadd.f32 %v580, %v929
    %931 = vdwg.mxu0
    %932 = vmatpush.msra.mxu0 %v314
    %933 = vmatpush.msra.mxu0 %v306
    %934 = vmatpush.msra.mxu0 %v298
    %935 = vmatpush.msra.mxu0 %v290
    %936 = vmatpush.msra.mxu0 %v282
    %937 = vmatpush.msra.mxu0 %v274
    %938 = vmatpush.msra.mxu0 %v266
    %939 = vmatpush.msra.mxu0 %v258
    %940 = vmatpush.msra.mxu0 %v250
    %941 = vmatpush.msra.mxu0 %v242
    %942 = vmatpush.msra.mxu0 %v234
    %943 = vmatpush.msra.mxu0 %v226
    %944 = vmatpush.msra.mxu0 %v218
    %945 = vmatpush.msra.mxu0 %v210
    %946 = vmatpush.msra.mxu0 %v202
    %947 = vmatpush.msra.mxu0 %v194
    %948 = vmatmul.f32.gmra.mxu0 %v59
    %v949 = vpop.f32.mrf.mxu0
    %v950 = vadd.f32 %v930, %v949
    %951 = vdwg.mxu0
    %952 = vmatpush.msra.mxu0 %v442
    %953 = vmatpush.msra.mxu0 %v434
    %954 = vmatpush.msra.mxu0 %v426
    %955 = vmatpush.msra.mxu0 %v418
    %956 = vmatpush.msra.mxu0 %v410
    %957 = vmatpush.msra.mxu0 %v402
    %958 = vmatpush.msra.mxu0 %v394
    %959 = vmatpush.msra.mxu0 %v386
    %960 = vmatpush.msra.mxu0 %v378
    %961 = vmatpush.msra.mxu0 %v370
    %962 = vmatpush.msra.mxu0 %v362
    %963 = vmatpush.msra.mxu0 %v354
    %964 = vmatpush.msra.mxu0 %v346
    %965 = vmatpush.msra.mxu0 %v338
    %966 = vmatpush.msra.mxu0 %v330
    %967 = vmatpush.msra.mxu0 %v322
    %968 = vmatmul.f32.gmra.mxu0 %v60
    %v969 = vpop.f32.mrf.mxu0
    %v970 = vadd.f32 %v950, %v969
    %971 = vdwg.mxu0
    %972 = vmatpush.msra.mxu0 %v570
    %973 = vmatpush.msra.mxu0 %v562
    %974 = vmatpush.msra.mxu0 %v554
    %975 = vmatpush.msra.mxu0 %v546
    %976 = vmatpush.msra.mxu0 %v538
    %977 = vmatpush.msra.mxu0 %v530
    %978 = vmatpush.msra.mxu0 %v522
    %979 = vmatpush.msra.mxu0 %v514
    %980 = vmatpush.msra.mxu0 %v506
    %981 = vmatpush.msra.mxu0 %v498
    %982 = vmatpush.msra.mxu0 %v490
    %983 = vmatpush.msra.mxu0 %v482
    %984 = vmatpush.msra.mxu0 %v474
    %985 = vmatpush.msra.mxu0 %v466
    %986 = vmatpush.msra.mxu0 %v458
    %987 = vmatpush.msra.mxu0 %v450
    %988 = vmatmul.f32.gmra.mxu0 %v61
    %v989 = vpop.f32.mrf.mxu0
    %v990 = vadd.f32 %v970, %v989
    %991 = vdwg.mxu0
    %992 = vmatpush.msra.mxu0 %v187
    %993 = vmatpush.msra.mxu0 %v179
    %994 = vmatpush.msra.mxu0 %v171
    %995 = vmatpush.msra.mxu0 %v163
    %996 = vmatpush.msra.mxu0 %v155
    %997 = vmatpush.msra.mxu0 %v147
    %998 = vmatpush.msra.mxu0 %v139
    %999 = vmatpush.msra.mxu0 %v131
    %1000 = vmatpush.msra.mxu0 %v123
    %1001 = vmatpush.msra.mxu0 %v115
    %1002 = vmatpush.msra.mxu0 %v107
    %1003 = vmatpush.msra.mxu0 %v99
    %1004 = vmatpush.msra.mxu0 %v91
    %1005 = vmatpush.msra.mxu0 %v83
    %1006 = vmatpush.msra.mxu0 %v75
    %1007 = vmatpush.msra.mxu0 %v67
    %1008 = vmatmul.f32.gmra.mxu0 %v58
    %v1009 = vpop.f32.mrf.mxu0
    %v1010 = vadd.f32 %v581, %v1009
    %1011 = vdwg.mxu0
    %1012 = vmatpush.msra.mxu0 %v315
    %1013 = vmatpush.msra.mxu0 %v307
    %1014 = vmatpush.msra.mxu0 %v299
    %1015 = vmatpush.msra.mxu0 %v291
    %1016 = vmatpush.msra.mxu0 %v283
    %1017 = vmatpush.msra.mxu0 %v275
    %1018 = vmatpush.msra.mxu0 %v267
    %1019 = vmatpush.msra.mxu0 %v259
    %1020 = vmatpush.msra.mxu0 %v251
    %1021 = vmatpush.msra.mxu0 %v243
    %1022 = vmatpush.msra.mxu0 %v235
    %1023 = vmatpush.msra.mxu0 %v227
    %1024 = vmatpush.msra.mxu0 %v219
    %1025 = vmatpush.msra.mxu0 %v211
    %1026 = vmatpush.msra.mxu0 %v203
    %1027 = vmatpush.msra.mxu0 %v195
    %1028 = vmatmul.f32.gmra.mxu0 %v59
    %v1029 = vpop.f32.mrf.mxu0
    %v1030 = vadd.f32 %v1010, %v1029
    %1031 = vdwg.mxu0
    %1032 = vmatpush.msra.mxu0 %v443
    %1033 = vmatpush.msra.mxu0 %v435
    %1034 = vmatpush.msra.mxu0 %v427
    %1035 = vmatpush.msra.mxu0 %v419
    %1036 = vmatpush.msra.mxu0 %v411
    %1037 = vmatpush.msra.mxu0 %v403
    %1038 = vmatpush.msra.mxu0 %v395
    %1039 = vmatpush.msra.mxu0 %v387
    %1040 = vmatpush.msra.mxu0 %v379
    %1041 = vmatpush.msra.mxu0 %v371
    %1042 = vmatpush.msra.mxu0 %v363
    %1043 = vmatpush.msra.mxu0 %v355
    %1044 = vmatpush.msra.mxu0 %v347
    %1045 = vmatpush.msra.mxu0 %v339
    %1046 = vmatpush.msra.mxu0 %v331
    %1047 = vmatpush.msra.mxu0 %v323
    %1048 = vmatmul.f32.gmra.mxu0 %v60
    %v1049 = vpop.f32.mrf.mxu0
    %v1050 = vadd.f32 %v1030, %v1049
    %1051 = vdwg.mxu0
    %1052 = vmatpush.msra.mxu0 %v571
    %1053 = vmatpush.msra.mxu0 %v563
    %1054 = vmatpush.msra.mxu0 %v555
    %1055 = vmatpush.msra.mxu0 %v547
    %1056 = vmatpush.msra.mxu0 %v539
    %1057 = vmatpush.msra.mxu0 %v531
    %1058 = vmatpush.msra.mxu0 %v523
    %1059 = vmatpush.msra.mxu0 %v515
    %1060 = vmatpush.msra.mxu0 %v507
    %1061 = vmatpush.msra.mxu0 %v499
    %1062 = vmatpush.msra.mxu0 %v491
    %1063 = vmatpush.msra.mxu0 %v483
    %1064 = vmatpush.msra.mxu0 %v475
    %1065 = vmatpush.msra.mxu0 %v467
    %1066 = vmatpush.msra.mxu0 %v459
    %1067 = vmatpush.msra.mxu0 %v451
    %1068 = vmatmul.f32.gmra.mxu0 %v61
    %v1069 = vpop.f32.mrf.mxu0
    %v1070 = vadd.f32 %v1050, %v1069
    %1071 = vdwg.mxu0
    %1072 = vmatpush.msra.mxu0 %v188
    %1073 = vmatpush.msra.mxu0 %v180
    %1074 = vmatpush.msra.mxu0 %v172
    %1075 = vmatpush.msra.mxu0 %v164
    %1076 = vmatpush.msra.mxu0 %v156
    %1077 = vmatpush.msra.mxu0 %v148
    %1078 = vmatpush.msra.mxu0 %v140
    %1079 = vmatpush.msra.mxu0 %v132
    %1080 = vmatpush.msra.mxu0 %v124
    %1081 = vmatpush.msra.mxu0 %v116
    %1082 = vmatpush.msra.mxu0 %v108
    %1083 = vmatpush.msra.mxu0 %v100
    %1084 = vmatpush.msra.mxu0 %v92
    %1085 = vmatpush.msra.mxu0 %v84
    %1086 = vmatpush.msra.mxu0 %v76
    %1087 = vmatpush.msra.mxu0 %v68
    %1088 = vmatmul.f32.gmra.mxu0 %v58
    %v1089 = vpop.f32.mrf.mxu0
    %v1090 = vadd.f32 %v582, %v1089
    %1091 = vdwg.mxu0
    %1092 = vmatpush.msra.mxu0 %v316
    %1093 = vmatpush.msra.mxu0 %v308
    %1094 = vmatpush.msra.mxu0 %v300
    %1095 = vmatpush.msra.mxu0 %v292
    %1096 = vmatpush.msra.mxu0 %v284
    %1097 = vmatpush.msra.mxu0 %v276
    %1098 = vmatpush.msra.mxu0 %v268
    %1099 = vmatpush.msra.mxu0 %v260
    %1100 = vmatpush.msra.mxu0 %v252
    %1101 = vmatpush.msra.mxu0 %v244
    %1102 = vmatpush.msra.mxu0 %v236
    %1103 = vmatpush.msra.mxu0 %v228
    %1104 = vmatpush.msra.mxu0 %v220
    %1105 = vmatpush.msra.mxu0 %v212
    %1106 = vmatpush.msra.mxu0 %v204
    %1107 = vmatpush.msra.mxu0 %v196
    %1108 = vmatmul.f32.gmra.mxu0 %v59
    %v1109 = vpop.f32.mrf.mxu0
    %v1110 = vadd.f32 %v1090, %v1109
    %1111 = vdwg.mxu0
    %1112 = vmatpush.msra.mxu0 %v444
    %1113 = vmatpush.msra.mxu0 %v436
    %1114 = vmatpush.msra.mxu0 %v428
    %1115 = vmatpush.msra.mxu0 %v420
    %1116 = vmatpush.msra.mxu0 %v412
    %1117 = vmatpush.msra.mxu0 %v404
    %1118 = vmatpush.msra.mxu0 %v396
    %1119 = vmatpush.msra.mxu0 %v388
    %1120 = vmatpush.msra.mxu0 %v380
    %1121 = vmatpush.msra.mxu0 %v372
    %1122 = vmatpush.msra.mxu0 %v364
    %1123 = vmatpush.msra.mxu0 %v356
    %1124 = vmatpush.msra.mxu0 %v348
    %1125 = vmatpush.msra.mxu0 %v340
    %1126 = vmatpush.msra.mxu0 %v332
    %1127 = vmatpush.msra.mxu0 %v324
    %1128 = vmatmul.f32.gmra.mxu0 %v60
    %v1129 = vpop.f32.mrf.mxu0
    %v1130 = vadd.f32 %v1110, %v1129
    %1131 = vdwg.mxu0
    %1132 = vmatpush.msra.mxu0 %v572
    %1133 = vmatpush.msra.mxu0 %v564
    %1134 = vmatpush.msra.mxu0 %v556
    %1135 = vmatpush.msra.mxu0 %v548
    %1136 = vmatpush.msra.mxu0 %v540
    %1137 = vmatpush.msra.mxu0 %v532
    %1138 = vmatpush.msra.mxu0 %v524
    %1139 = vmatpush.msra.mxu0 %v516
    %1140 = vmatpush.msra.mxu0 %v508
    %1141 = vmatpush.msra.mxu0 %v500
    %1142 = vmatpush.msra.mxu0 %v492
    %1143 = vmatpush.msra.mxu0 %v484
    %1144 = vmatpush.msra.mxu0 %v476
    %1145 = vmatpush.msra.mxu0 %v468
    %1146 = vmatpush.msra.mxu0 %v460
    %1147 = vmatpush.msra.mxu0 %v452
    %1148 = vmatmul.f32.gmra.mxu0 %v61
    %v1149 = vpop.f32.mrf.mxu0
    %v1150 = vadd.f32 %v1130, %v1149
    %1151 = vdwg.mxu0
    %1152 = vmatpush.msra.mxu0 %v189
    %1153 = vmatpush.msra.mxu0 %v181
    %1154 = vmatpush.msra.mxu0 %v173
    %1155 = vmatpush.msra.mxu0 %v165
    %1156 = vmatpush.msra.mxu0 %v157
    %1157 = vmatpush.msra.mxu0 %v149
    %1158 = vmatpush.msra.mxu0 %v141
    %1159 = vmatpush.msra.mxu0 %v133
    %1160 = vmatpush.msra.mxu0 %v125
    %1161 = vmatpush.msra.mxu0 %v117
    %1162 = vmatpush.msra.mxu0 %v109
    %1163 = vmatpush.msra.mxu0 %v101
    %1164 = vmatpush.msra.mxu0 %v93
    %1165 = vmatpush.msra.mxu0 %v85
    %1166 = vmatpush.msra.mxu0 %v77
    %1167 = vmatpush.msra.mxu0 %v69
    %1168 = vmatmul.f32.gmra.mxu0 %v58
    %v1169 = vpop.f32.mrf.mxu0
    %v1170 = vadd.f32 %v583, %v1169
    %1171 = vdwg.mxu0
    %1172 = vmatpush.msra.mxu0 %v317
    %1173 = vmatpush.msra.mxu0 %v309
    %1174 = vmatpush.msra.mxu0 %v301
    %1175 = vmatpush.msra.mxu0 %v293
    %1176 = vmatpush.msra.mxu0 %v285
    %1177 = vmatpush.msra.mxu0 %v277
    %1178 = vmatpush.msra.mxu0 %v269
    %1179 = vmatpush.msra.mxu0 %v261
    %1180 = vmatpush.msra.mxu0 %v253
    %1181 = vmatpush.msra.mxu0 %v245
    %1182 = vmatpush.msra.mxu0 %v237
    %1183 = vmatpush.msra.mxu0 %v229
    %1184 = vmatpush.msra.mxu0 %v221
    %1185 = vmatpush.msra.mxu0 %v213
    %1186 = vmatpush.msra.mxu0 %v205
    %1187 = vmatpush.msra.mxu0 %v197
    %1188 = vmatmul.f32.gmra.mxu0 %v59
    %v1189 = vpop.f32.mrf.mxu0
    %v1190 = vadd.f32 %v1170, %v1189
    %1191 = vdwg.mxu0
    %1192 = vmatpush.msra.mxu0 %v445
    %1193 = vmatpush.msra.mxu0 %v437
    %1194 = vmatpush.msra.mxu0 %v429
    %1195 = vmatpush.msra.mxu0 %v421
    %1196 = vmatpush.msra.mxu0 %v413
    %1197 = vmatpush.msra.mxu0 %v405
    %1198 = vmatpush.msra.mxu0 %v397
    %1199 = vmatpush.msra.mxu0 %v389
    %1200 = vmatpush.msra.mxu0 %v381
    %1201 = vmatpush.msra.mxu0 %v373
    %1202 = vmatpush.msra.mxu0 %v365
    %1203 = vmatpush.msra.mxu0 %v357
    %1204 = vmatpush.msra.mxu0 %v349
    %1205 = vmatpush.msra.mxu0 %v341
    %1206 = vmatpush.msra.mxu0 %v333
    %1207 = vmatpush.msra.mxu0 %v325
    %1208 = vmatmul.f32.gmra.mxu0 %v60
    %v1209 = vpop.f32.mrf.mxu0
    %v1210 = vadd.f32 %v1190, %v1209
    %1211 = vdwg.mxu0
    %1212 = vmatpush.msra.mxu0 %v573
    %1213 = vmatpush.msra.mxu0 %v565
    %1214 = vmatpush.msra.mxu0 %v557
    %1215 = vmatpush.msra.mxu0 %v549
    %1216 = vmatpush.msra.mxu0 %v541
    %1217 = vmatpush.msra.mxu0 %v533
    %1218 = vmatpush.msra.mxu0 %v525
    %1219 = vmatpush.msra.mxu0 %v517
    %1220 = vmatpush.msra.mxu0 %v509
    %1221 = vmatpush.msra.mxu0 %v501
    %1222 = vmatpush.msra.mxu0 %v493
    %1223 = vmatpush.msra.mxu0 %v485
    %1224 = vmatpush.msra.mxu0 %v477
    %1225 = vmatpush.msra.mxu0 %v469
    %1226 = vmatpush.msra.mxu0 %v461
    %1227 = vmatpush.msra.mxu0 %v453
    %1228 = vmatmul.f32.gmra.mxu0 %v61
    %v1229 = vpop.f32.mrf.mxu0
    %v1230 = vadd.f32 %v1210, %v1229
    %1231 = vdwg.mxu0
    %1232 = vst [vmem:[#allocation8] sm:$0xff] %v670
    %1233 = vst [vmem:[#allocation8 + $0x8] sm:$0xff] %v750
    %1234 = vst [vmem:[#allocation8 + $0x10] sm:$0xff] %v830
    %1235 = vst [vmem:[#allocation8 + $0x18] sm:$0xff] %v910
    %1236 = vst [vmem:[#allocation8 + $0x20] sm:$0xff] %v990
    %1237 = vst [vmem:[#allocation8 + $0x28] sm:$0xff] %v1070
    %1238 = vst [vmem:[#allocation8 + $0x30] sm:$0xff] %v1150
    %1239 = vst [vmem:[#allocation8 + $0x38] sm:$0xff] %v1230
    // Predicated region
    $region26: #{tpu_custom_call.1} parent=1 // pred_check
      _
    $region27: #{tpu_custom_call.1} parent=1 // pred_check_branch
      %1241 = sbr.rel (0) target = $region29
    $region28: #{tpu_custom_call.1} parent=1 // pred_region
      %1243 = vsyncadd [#allocation4], 0
      %s1245 = sshll.u32 [#allocation8], 4
      %s1246 = int_to_ptr.vmem [resolvable:$true] %s1245
      %s1247 = sshll.u32 %s3, 4
      %s1248 = int_to_ptr.hbm [resolvable:$true] %s1247
      %1250 = dma.vmem_to_hbm [thread:$0]  %s1246, 1024, %s1248, [#allocation4]
    $region29: #{tpu_custom_call.1} parent=1 // pred_fallthru
      _
    // Predicated region
    $region30: #{tpu_custom_call.1} parent=1 // pred_check
      _
    $region31: #{tpu_custom_call.1} parent=1 // pred_check_branch
      %1252 = sbr.rel (0) target = $region33
    $region32: #{tpu_custom_call.1} parent=1 // pred_region
      %1254 = dma.done [#allocation4], 1024
    $region33: #{tpu_custom_call.1} parent=1 // pred_fallthru
      _
    %1255 = vsyncpa [#allocation3], 1
    %1256 = vsyncpa [#allocation6], 1
    %1257 = vsyncpa [#allocation4], 1

</llo_original>
